<compile_context>
chip_gen: v7x
topology: tpu7x:2x2x1
jax: 0.10.0
libtpu: 0.0.40
codegen_flags: <defaults>
</compile_context>

<pallas_src>
import jax
import jax.numpy as jnp
from jax.experimental import pallas as pl
from jax.experimental.pallas import tpu as pltpu

# ---------------- config ----------------
DIM_EMB = 128
DIM_PE_IN = 32
DIM_PE_OUT = 64
DIM_HID = 2 * DIM_PE_OUT          # 128 (n_layers=2 MLP hidden width)
DIM_X = DIM_EMB - DIM_PE_OUT      # 64  (expand_x=False -> x must already be this width)
DEFAULT_TILE_N = 4096             # rows per grid step; ~12 MiB VMEM incl. double-buffering
BN_EPS = 1e-5


def _round_up(a, m):
    return ((a + m - 1) // m) * m


def _choose_tile_n(n, tile_n):
    """Pick a row-tile size: multiple of 8, capped so large N keeps >=2 grid steps."""
    if n <= tile_n:
        return n                                   # single full-extent block
    # Keep at least 2 grid steps so the parallel N axis can shard across the
    # two TensorCores on v7x; round to a sublane multiple.
    tile_n = min(tile_n, _round_up(pl.cdiv(n, 2), 8))
    return max(8, _round_up(tile_n, 8))


def _gpse_kernel(x_ref, pe_ref, scale_ref, shift_ref,
                 w1_ref, b1_ref, w2_ref, b2_ref, out_ref):
    # Eval-mode BatchNorm1d in f32 (VPU FMA; free at this arithmetic intensity).
    pe = pe_ref[...] * scale_ref[...] + shift_ref[...]

    # MLP layer 1: Linear(dim_pe_in -> 2*dim_pe_out) + ReLU  (bf16 MXU, f32 acc)
    h1 = jnp.dot(pe.astype(jnp.bfloat16), w1_ref[...],
                 preferred_element_type=jnp.float32)
    h1 = jnp.maximum(h1 + b1_ref[...], 0.0)

    # MLP layer 2: Linear(2*dim_pe_out -> dim_pe_out) + ReLU  (bf16 MXU, f32 acc)
    h2 = jnp.dot(h1.astype(jnp.bfloat16), w2_ref[...],
                 preferred_element_type=jnp.float32)
    h2 = jnp.maximum(h2 + b2_ref[...], 0.0)

    # torch.cat((h, pos_enc), dim=1) — two direct slice stores into the
    # 128-lane-dense output block (no concat temporary).
    out_ref[:, :DIM_X] = x_ref[...].astype(out_ref.dtype)
    out_ref[:, DIM_X:] = h2.astype(out_ref.dtype)


def gpse_node_encoder(x, pos_enc, params, *, tile_n=DEFAULT_TILE_N):
    """x: [N, DIM_X] f32, pos_enc: [N, DIM_PE_IN] f32 -> [N, DIM_EMB] f32."""
    n = x.shape[0]
    assert x.shape == (n, DIM_X) and pos_enc.shape == (n, DIM_PE_IN)

    tile_n = _choose_tile_n(n, tile_n)
    grid = (pl.cdiv(n, tile_n),)   # ragged last block handled by Pallas (masked writes)

    # Eval-mode BatchNorm1d affine, applied in-kernel in f32:
    #   pe_norm = pe * scale + shift
    scale = (params["bn_gamma"] /
             jnp.sqrt(params["bn_var"] + BN_EPS)).reshape(1, DIM_PE_IN)
    shift = (params["bn_beta"] -
             params["bn_mean"] * scale[0]).reshape(1, DIM_PE_IN)
    w1 = params["w1"].astype(jnp.bfloat16)                # [32, 128]
    b1 = params["b1"].reshape(1, DIM_HID)                 # f32
    w2 = params["w2"].astype(jnp.bfloat16)                # [128, 64]
    b2 = params["b2"].reshape(1, DIM_PE_OUT)              # f32

    row_spec = lambda d: pl.BlockSpec((tile_n, d), lambda i: (i, 0))
    full_spec = lambda r, c: pl.BlockSpec((r, c), lambda i: (0, 0))

    # HBM-bound kernel: ~896 B/row traffic, ~24.6 kFLOP/row, no transcendentals.
    cost = pl.CostEstimate(
        flops=2 * n * (DIM_PE_IN * DIM_HID + DIM_HID * DIM_PE_OUT),
        transcendentals=0,
        bytes_accessed=n * 4 * (DIM_X + DIM_PE_IN + DIM_EMB),
    )

    out = pl.pallas_call(
        _gpse_kernel,
        out_shape=jax.ShapeDtypeStruct((n, DIM_EMB), jnp.float32),
        grid_spec=pltpu.PrefetchScalarGridSpec(
            num_scalar_prefetch=0,
            grid=grid,
            in_specs=[
                row_spec(DIM_X),                 # x tile
                row_spec(DIM_PE_IN),             # pos_enc tile
                full_spec(1, DIM_PE_IN),         # BN scale (f32)
                full_spec(1, DIM_PE_IN),         # BN shift (f32)
                full_spec(DIM_PE_IN, DIM_HID),   # W1 (bf16)
                full_spec(1, DIM_HID),           # b1 (f32)
                full_spec(DIM_HID, DIM_PE_OUT),  # W2 (bf16)
                full_spec(1, DIM_PE_OUT),        # b2 (f32)
            ],
            out_specs=row_spec(DIM_EMB),
        ),
        # Per-step VMEM at tile_n=4096: ~7 MiB double-buffered tiles + ~3 MiB
        # intermediates — well under the 32 MiB scoped default on v6e/v7x.
        compiler_params=pltpu.CompilerParams(
            dimension_semantics=("parallel",)),
        cost_estimate=cost,
    )(x, pos_enc, scale, shift, w1, b1, w2, b2)

    return out


def init_params(key):
    """Deterministic synthetic parameters matching the PyTorch module shapes."""
    ks = jax.random.split(key, 6)
    # torch Linear stores weight as [out, in]; we keep [in, out] for x @ W.
    w1 = jax.random.normal(ks[0], (DIM_PE_IN, DIM_HID), jnp.float32) * 0.05
    b1 = jax.random.normal(ks[1], (DIM_HID,), jnp.float32) * 0.05
    w2 = jax.random.normal(ks[2], (DIM_HID, DIM_PE_OUT), jnp.float32) * 0.05
    b2 = jax.random.normal(ks[3], (DIM_PE_OUT,), jnp.float32) * 0.05
    bn_gamma = 1.0 + 0.1 * jax.random.normal(ks[4], (DIM_PE_IN,), jnp.float32)
    bn_beta = 0.1 * jax.random.normal(ks[5], (DIM_PE_IN,), jnp.float32)
    bn_mean = jnp.zeros((DIM_PE_IN,), jnp.float32)
    bn_var = jnp.ones((DIM_PE_IN,), jnp.float32)
    return dict(w1=w1, b1=b1, w2=w2, b2=b2,
                bn_gamma=bn_gamma, bn_beta=bn_beta,
                bn_mean=bn_mean, bn_var=bn_var)


def reference_f32(x, pos_enc, params):
    """Pure f32 reference matching the PyTorch eval-mode forward."""
    pe = (pos_enc - params["bn_mean"]) / jnp.sqrt(params["bn_var"] + BN_EPS)
    pe = pe * params["bn_gamma"] + params["bn_beta"]
    pe = jnp.maximum(pe @ params["w1"] + params["b1"], 0.0)
    pe = jnp.maximum(pe @ params["w2"] + params["b2"], 0.0)
    return jnp.concatenate([x, pe], axis=1)


def reference_kernel_numerics(x, pos_enc, params):
    """Reference mirroring the kernel's numerics (f32 BN, bf16 matmul operands)."""
    scale = params["bn_gamma"] / jnp.sqrt(params["bn_var"] + BN_EPS)
    shift = params["bn_beta"] - params["bn_mean"] * scale
    pe = pos_enc * scale + shift
    h1 = jnp.maximum(
        jnp.dot(pe.astype(jnp.bfloat16), params["w1"].astype(jnp.bfloat16),
                preferred_element_type=jnp.float32) + params["b1"], 0.0)
    h2 = jnp.maximum(
        jnp.dot(h1.astype(jnp.bfloat16), params["w2"].astype(jnp.bfloat16),
                preferred_element_type=jnp.float32) + params["b2"], 0.0)
    return jnp.concatenate([x, h2], axis=1)


if __name__ == "__main__":
    key = jax.random.PRNGKey(0)
    kx, kpe, kp = jax.random.split(key, 3)
    params = init_params(kp)

    # Small demo: N not a multiple of 8 (single full-extent block path).
    N = 100
    x = jax.random.normal(kx, (N, DIM_X), jnp.float32)
    pos_enc = jax.random.normal(kpe, (N, DIM_PE_IN), jnp.float32)

    out = gpse_node_encoder(x, pos_enc, params)
    out = jax.block_until_ready(out)
    assert out.shape == (N, DIM_EMB)

    # Tight check against a reference with the same bf16-MXU numerics.
    ref_bf16 = reference_kernel_numerics(x, pos_enc, params)
    assert jnp.max(jnp.abs(out - ref_bf16)) < 2e-3
    # Loose sanity check against the pure-f32 PyTorch-equivalent reference.
    ref_f32 = reference_f32(x, pos_enc, params)
    assert jnp.max(jnp.abs(out - ref_f32)) < 5e-2

    # Second check: multi-step grid with a ragged (masked) last block.
    N2 = 1000
    x2 = jax.random.normal(kx, (N2, DIM_X), jnp.float32)
    pe2 = jax.random.normal(kpe, (N2, DIM_PE_IN), jnp.float32)
    out2 = jax.block_until_ready(gpse_node_encoder(x2, pe2, params, tile_n=256))
    assert out2.shape == (N2, DIM_EMB)
    ref2 = reference_kernel_numerics(x2, pe2, params)
    assert jnp.max(jnp.abs(out2 - ref2)) < 2e-3

    print("KERNEL_OK")
</pallas_src>

<mosaic_0001>
module attributes {stable_mosaic.version = 11 : i64} {
  func.func @_gpse_kernel(%arg0: i32, %arg1: memref<100x64xf32, #tpu.memory_space<vmem>>, %arg2: memref<100x32xf32, #tpu.memory_space<vmem>>, %arg3: memref<1x32xf32, #tpu.memory_space<vmem>>, %arg4: memref<1x32xf32, #tpu.memory_space<vmem>>, %arg5: memref<32x128xbf16, #tpu.memory_space<vmem>>, %arg6: memref<1x128xf32, #tpu.memory_space<vmem>>, %arg7: memref<128x64xbf16, #tpu.memory_space<vmem>>, %arg8: memref<1x64xf32, #tpu.memory_space<vmem>>, %arg9: memref<100x128xf32, #tpu.memory_space<vmem>>) attributes {dimension_semantics = [#tpu.dimension_semantics<parallel>], iteration_bounds = array<i64: 1>, scalar_prefetch = 0 : i64, scratch_operands = 0 : i64, tpu.core_type = #tpu.core_type<tc>, window_params = [{transform_indices = @transform_0, window_bounds = array<i64: 100, 64>}, {transform_indices = @transform_1, window_bounds = array<i64: 100, 32>}, {pipeline_mode = #tpu.pipeline_mode<synchronous>, transform_indices = @transform_2, window_bounds = array<i64: 1, 32>}, {pipeline_mode = #tpu.pipeline_mode<synchronous>, transform_indices = @transform_3, window_bounds = array<i64: 1, 32>}, {pipeline_mode = #tpu.pipeline_mode<synchronous>, transform_indices = @transform_4, window_bounds = array<i64: 32, 128>}, {pipeline_mode = #tpu.pipeline_mode<synchronous>, transform_indices = @transform_5, window_bounds = array<i64: 1, 128>}, {pipeline_mode = #tpu.pipeline_mode<synchronous>, transform_indices = @transform_6, window_bounds = array<i64: 128, 64>}, {pipeline_mode = #tpu.pipeline_mode<synchronous>, transform_indices = @transform_7, window_bounds = array<i64: 1, 64>}, {transform_indices = @transform_8, window_bounds = array<i64: 100, 128>}]} {
    %c0 = arith.constant 0 : index
    %c0_0 = arith.constant 0 : index
    %0 = vector.load %arg2[%c0, %c0_0] : memref<100x32xf32, #tpu.memory_space<vmem>>, vector<100x32xf32>
    %c0_1 = arith.constant 0 : index
    %c0_2 = arith.constant 0 : index
    %1 = vector.load %arg3[%c0_1, %c0_2] : memref<1x32xf32, #tpu.memory_space<vmem>>, vector<1x32xf32>
    %2 = vector.broadcast %1 : vector<1x32xf32> to vector<100x32xf32>
    %3 = arith.mulf %0, %2 : vector<100x32xf32>
    %c0_3 = arith.constant 0 : index
    %c0_4 = arith.constant 0 : index
    %4 = vector.load %arg4[%c0_3, %c0_4] : memref<1x32xf32, #tpu.memory_space<vmem>>, vector<1x32xf32>
    %5 = vector.broadcast %4 : vector<1x32xf32> to vector<100x32xf32>
    %6 = arith.addf %3, %5 : vector<100x32xf32>
    %7 = arith.truncf %6 : vector<100x32xf32> to vector<100x32xbf16>
    %c0_5 = arith.constant 0 : index
    %c0_6 = arith.constant 0 : index
    %8 = vector.load %arg5[%c0_5, %c0_6] : memref<32x128xbf16, #tpu.memory_space<vmem>>, vector<32x128xbf16>
    %cst = arith.constant dense<0.000000e+00> : vector<100x128xf32>
    %9 = tpu.matmul %7, %8, %cst {dimension_numbers = #tpu.dot_dimension_numbers<[1], [0], [0], [1], [0, 0, 1, 1], [], []>} : vector<100x32xbf16>, vector<32x128xbf16>, vector<100x128xf32> -> vector<100x128xf32>
    %c0_7 = arith.constant 0 : index
    %c0_8 = arith.constant 0 : index
    %10 = vector.load %arg6[%c0_7, %c0_8] : memref<1x128xf32, #tpu.memory_space<vmem>>, vector<1x128xf32>
    %11 = vector.broadcast %10 : vector<1x128xf32> to vector<100x128xf32>
    %12 = arith.addf %9, %11 : vector<100x128xf32>
    %cst_9 = arith.constant 0.000000e+00 : f32
    %13 = vector.broadcast %cst_9 : f32 to vector<100x128xf32>
    %14 = arith.maximumf %12, %13 : vector<100x128xf32>
    %15 = arith.truncf %14 : vector<100x128xf32> to vector<100x128xbf16>
    %c0_10 = arith.constant 0 : index
    %c0_11 = arith.constant 0 : index
    %16 = vector.load %arg7[%c0_10, %c0_11] : memref<128x64xbf16, #tpu.memory_space<vmem>>, vector<128x64xbf16>
    %cst_12 = arith.constant dense<0.000000e+00> : vector<100x64xf32>
    %17 = tpu.matmul %15, %16, %cst_12 {dimension_numbers = #tpu.dot_dimension_numbers<[1], [0], [0], [1], [0, 0, 1, 1], [], []>} : vector<100x128xbf16>, vector<128x64xbf16>, vector<100x64xf32> -> vector<100x64xf32>
    %c0_13 = arith.constant 0 : index
    %c0_14 = arith.constant 0 : index
    %18 = vector.load %arg8[%c0_13, %c0_14] : memref<1x64xf32, #tpu.memory_space<vmem>>, vector<1x64xf32>
    %19 = vector.broadcast %18 : vector<1x64xf32> to vector<100x64xf32>
    %20 = arith.addf %17, %19 : vector<100x64xf32>
    %cst_15 = arith.constant 0.000000e+00 : f32
    %21 = vector.broadcast %cst_15 : f32 to vector<100x64xf32>
    %22 = arith.maximumf %20, %21 : vector<100x64xf32>
    %c0_16 = arith.constant 0 : index
    %c0_17 = arith.constant 0 : index
    %23 = vector.load %arg1[%c0_16, %c0_17] : memref<100x64xf32, #tpu.memory_space<vmem>>, vector<100x64xf32>
    %c0_18 = arith.constant 0 : index
    %c0_19 = arith.constant 0 : index
    %24 = vector.load %arg9[%c0_18, %c0_19] : memref<100x128xf32, #tpu.memory_space<vmem>>, vector<100x64xf32>
    tpu.vector_store %arg9[%c0_18, %c0_19], %23 {strides = array<i32>} : memref<100x128xf32, #tpu.memory_space<vmem>>, vector<100x64xf32>,
    %c0_20 = arith.constant 0 : index
    %c64 = arith.constant 64 : index
    %25 = vector.load %arg9[%c0_20, %c64] : memref<100x128xf32, #tpu.memory_space<vmem>>, vector<100x64xf32>
    tpu.vector_store %arg9[%c0_20, %c64], %22 {strides = array<i32>} : memref<100x128xf32, #tpu.memory_space<vmem>>, vector<100x64xf32>,
    return
  }
  func.func @transform_0(%arg0: i32) -> (i32, i32) {
    %c0_i32 = arith.constant 0 : i32
    %c0_i32_0 = arith.constant 0 : i32
    return %arg0, %c0_i32 : i32, i32
  }
  func.func @transform_1(%arg0: i32) -> (i32, i32) {
    %c0_i32 = arith.constant 0 : i32
    %c0_i32_0 = arith.constant 0 : i32
    return %arg0, %c0_i32 : i32, i32
  }
  func.func @transform_2(%arg0: i32) -> (i32, i32) {
    %c0_i32 = arith.constant 0 : i32
    %c0_i32_0 = arith.constant 0 : i32
    %c0_i32_1 = arith.constant 0 : i32
    return %c0_i32, %c0_i32_0 : i32, i32
  }
  func.func @transform_3(%arg0: i32) -> (i32, i32) {
    %c0_i32 = arith.constant 0 : i32
    %c0_i32_0 = arith.constant 0 : i32
    %c0_i32_1 = arith.constant 0 : i32
    return %c0_i32, %c0_i32_0 : i32, i32
  }
  func.func @transform_4(%arg0: i32) -> (i32, i32) {
    %c0_i32 = arith.constant 0 : i32
    %c0_i32_0 = arith.constant 0 : i32
    %c0_i32_1 = arith.constant 0 : i32
    return %c0_i32, %c0_i32_0 : i32, i32
  }
  func.func @transform_5(%arg0: i32) -> (i32, i32) {
    %c0_i32 = arith.constant 0 : i32
    %c0_i32_0 = arith.constant 0 : i32
    %c0_i32_1 = arith.constant 0 : i32
    return %c0_i32, %c0_i32_0 : i32, i32
  }
  func.func @transform_6(%arg0: i32) -> (i32, i32) {
    %c0_i32 = arith.constant 0 : i32
    %c0_i32_0 = arith.constant 0 : i32
    %c0_i32_1 = arith.constant 0 : i32
    return %c0_i32, %c0_i32_0 : i32, i32
  }
  func.func @transform_7(%arg0: i32) -> (i32, i32) {
    %c0_i32 = arith.constant 0 : i32
    %c0_i32_0 = arith.constant 0 : i32
    %c0_i32_1 = arith.constant 0 : i32
    return %c0_i32, %c0_i32_0 : i32, i32
  }
  func.func @transform_8(%arg0: i32) -> (i32, i32) {
    %c0_i32 = arith.constant 0 : i32
    %c0_i32_0 = arith.constant 0 : i32
    return %arg0, %c0_i32 : i32, i32
  }
}

</mosaic_0001>

<llo_original>
// kernel: tpu_custom_call.1
$region0: #{tpu_custom_call.1}
  #allocation0 [shape = 'u32[]', space=smem, size = 0x4, offset = 0x4, fixed_abs, tag = 'smem constant byte address 0x4 - core index']
  #allocation1 [shape = 'u32[144,128]{1,0:T(1,128)}', space=vmem, size = 0x12000, scoped, tag = 'internal scratch']
  %s0 = inlined_call_operand.vmem [shape: f32[100,64], index: 0, kind: input, shape index: {}]
  %s1 = inlined_call_operand.vmem [shape: f32[100,32], index: 1, kind: input, shape index: {}]
  %s2 = inlined_call_operand.vmem [shape: f32[1,32], index: 2, kind: input, shape index: {}]
  %s3 = inlined_call_operand.vmem [shape: f32[1,32], index: 3, kind: input, shape index: {}]
  %s4 = inlined_call_operand.vmem [shape: bf16[32,128], index: 4, kind: input, shape index: {}]
  %s5 = inlined_call_operand.vmem [shape: f32[1,128], index: 5, kind: input, shape index: {}]
  %s6 = inlined_call_operand.vmem [shape: bf16[128,64], index: 6, kind: input, shape index: {}]
  %s7 = inlined_call_operand.vmem [shape: f32[1,64], index: 7, kind: input, shape index: {}]
  %s8 = inlined_call_operand.hbm [shape: f32[100,128], index: 8, kind: output, shape index: {}]
  %s9 = sld [smem:[#allocation0]]
  $region42: #{tpu_custom_call.1} parent=0
    _
  %s11 = ssub.s32 1, %s9
  %s12 = scalar_select 0, %s11, %s9
  $region1: #{tpu_custom_call.1} parent=0
    #allocation2 [shape = 'u8[53248]{0}', space=vmem, size = 0xd000, scoped, tag = 'output window, operand 0, single buffered']
    #allocation3 [shape = 's32[1]{0}', space=sflag, size = 0x4, scoped, tag = 'scoped memory for tpu_custom_call.1']
    %13 = vsyncpa [#allocation3], 0
    // Predicated region
    $region2: #{tpu_custom_call.1} parent=1 // pred_check
      _
    $region3: #{tpu_custom_call.1} parent=1 // pred_check_branch
      %15 = sbr.rel (0) target = $region5
    $region4: #{tpu_custom_call.1} parent=1 // pred_region
      _
    $region5: #{tpu_custom_call.1} parent=1 // pred_fallthru
      _
    // Predicated region
    $region6: #{tpu_custom_call.1} parent=1 // pred_check
      _
    $region7: #{tpu_custom_call.1} parent=1 // pred_check_branch
      %17 = sbr.rel (0) target = $region9
    $region8: #{tpu_custom_call.1} parent=1 // pred_region
      _
    $region9: #{tpu_custom_call.1} parent=1 // pred_fallthru
      _
    // Predicated region
    $region10: #{tpu_custom_call.1} parent=1 // pred_check
      _
    $region11: #{tpu_custom_call.1} parent=1 // pred_check_branch
      %19 = sbr.rel (0) target = $region13
    $region12: #{tpu_custom_call.1} parent=1 // pred_region
      _
    $region13: #{tpu_custom_call.1} parent=1 // pred_fallthru
      _
    // Predicated region
    $region14: #{tpu_custom_call.1} parent=1 // pred_check
      _
    $region15: #{tpu_custom_call.1} parent=1 // pred_check_branch
      %21 = sbr.rel (0) target = $region17
    $region16: #{tpu_custom_call.1} parent=1 // pred_region
      _
    $region17: #{tpu_custom_call.1} parent=1 // pred_fallthru
      _
    // Predicated region
    $region18: #{tpu_custom_call.1} parent=1 // pred_check
      _
    $region19: #{tpu_custom_call.1} parent=1 // pred_check_branch
      %23 = sbr.rel (0) target = $region21
    $region20: #{tpu_custom_call.1} parent=1 // pred_region
      _
    $region21: #{tpu_custom_call.1} parent=1 // pred_fallthru
      _
    // Predicated region
    $region22: #{tpu_custom_call.1} parent=1 // pred_check
      _
    $region23: #{tpu_custom_call.1} parent=1 // pred_check_branch
      %25 = sbr.rel (0) target = $region25
    $region24: #{tpu_custom_call.1} parent=1 // pred_region
      _
    $region25: #{tpu_custom_call.1} parent=1 // pred_fallthru
      _
    // Predicated region
    $region26: #{tpu_custom_call.1} parent=1 // pred_check
      _
    $region27: #{tpu_custom_call.1} parent=1 // pred_check_branch
      %27 = sbr.rel (0) target = $region29
    $region28: #{tpu_custom_call.1} parent=1 // pred_region
      _
    $region29: #{tpu_custom_call.1} parent=1 // pred_fallthru
      _
    // Predicated region
    $region30: #{tpu_custom_call.1} parent=1 // pred_check
      _
    $region31: #{tpu_custom_call.1} parent=1 // pred_check_branch
      %29 = sbr.rel (0) target = $region33
    $region32: #{tpu_custom_call.1} parent=1 // pred_region
      _
    $region33: #{tpu_custom_call.1} parent=1 // pred_fallthru
      _
    %v31 = vld [vmem:[%s1] sm:$0xff]
    %v32 = vld [vmem:[%s1 + $0x8] sm:$0xff]
    %v33 = vld [vmem:[%s1 + $0x10] sm:$0xff]
    %v34 = vld [vmem:[%s1 + $0x18] sm:$0xff]
    %v35 = vld [vmem:[%s1 + $0x20] sm:$0xff]
    %v36 = vld [vmem:[%s1 + $0x28] sm:$0xff]
    %v37 = vld [vmem:[%s1 + $0x30] sm:$0xff]
    %v38 = vld [vmem:[%s1 + $0x38] sm:$0xff]
    %v39 = vld [vmem:[%s1 + $0x40] sm:$0xff]
    %v40 = vld [vmem:[%s1 + $0x48] sm:$0xff]
    %v41 = vld [vmem:[%s1 + $0x50] sm:$0xff]
    %v42 = vld [vmem:[%s1 + $0x58] sm:$0xff]
    %v43 = vld [vmem:[%s1 + $0x60] sm:$0xf]
    %v44 = vld [vmem:[%s2] sm:$0x1]
    %v46 = vlaneseq
    %v47 = vshrl.u32 %v46, 7
    %v48 = vsub.s32 0, %v47
    %v49 = vrot.slane %v44, %v48
    %v51 = vmul.f32 %v31, %v49
    %v52 = vmul.f32 %v32, %v49
    %v53 = vmul.f32 %v33, %v49
    %v54 = vmul.f32 %v34, %v49
    %v55 = vmul.f32 %v35, %v49
    %v56 = vmul.f32 %v36, %v49
    %v57 = vmul.f32 %v37, %v49
    %v58 = vmul.f32 %v38, %v49
    %v59 = vmul.f32 %v39, %v49
    %v60 = vmul.f32 %v40, %v49
    %v61 = vmul.f32 %v41, %v49
    %v62 = vmul.f32 %v42, %v49
    %v63 = vmul.f32 %v43, %v49
    %v64 = vld [vmem:[%s3] sm:$0x1]
    %v66 = vlaneseq
    %v67 = vshrl.u32 %v66, 7
    %v68 = vsub.s32 0, %v67
    %v69 = vrot.slane %v64, %v68
    %v71 = vadd.f32 %v51, %v69
    %v72 = vadd.f32 %v52, %v69
    %v73 = vadd.f32 %v53, %v69
    %v74 = vadd.f32 %v54, %v69
    %v75 = vadd.f32 %v55, %v69
    %v76 = vadd.f32 %v56, %v69
    %v77 = vadd.f32 %v57, %v69
    %v78 = vadd.f32 %v58, %v69
    %v79 = vadd.f32 %v59, %v69
    %v80 = vadd.f32 %v60, %v69
    %v81 = vadd.f32 %v61, %v69
    %v82 = vadd.f32 %v62, %v69
    %v83 = vadd.f32 %v63, %v69
    %v84 = vpack.c.bf16 %v72, %v71
    %v85 = vpack.c.bf16 %v74, %v73
    %v86 = vpack.c.bf16 %v76, %v75
    %v87 = vpack.c.bf16 %v78, %v77
    %v88 = vpack.c.bf16 %v80, %v79
    %v89 = vpack.c.bf16 %v82, %v81
    %v90 = vpack.c.bf16 %v83, %v83
    %v91 = vld [vmem:[%s4] sm:$0xf]
    %v92 = vld [vmem:[%s4 + $0x4] sm:$0xf]
    %v93 = vld [vmem:[%s4 + $0x8] sm:$0xf]
    %v94 = vld [vmem:[%s4 + $0xc] sm:$0xf]
    %v95 = vld [vmem:[%s5] sm:$0x1]
    %v97 = vlaneseq
    %v98 = vshrl.u32 %v97, 7
    %v99 = vsub.s32 0, %v98
    %v100 = vrot.slane %v95, %v99
    %v106 = vunpack.c.l.b16 %v91
    %v107 = vunpack.c.l.b16 %v92
    %v108 = vunpack.c.l.b16 %v93
    %v109 = vunpack.c.l.b16 %v94
    %v110 = vpack.c.b16 %v107, %v106
    %v111 = vpack.c.b16 %v109, %v108
    %vm114 = vcmask 261120
    %v116 = vsel %vm114, %v84, 0
    %v119 = vsel %vm114, %v85, 0
    %v122 = vsel %vm114, %v86, 0
    %v125 = vsel %vm114, %v87, 0
    %v128 = vsel %vm114, %v88, 0
    %v131 = vsel %vm114, %v89, 0
    %v134 = vsel %vm114, %v90, 0
    %136 = vmatprep.subr.bf16.mxu0 0
    %137 = vmatpush1.bf16.msra.mxu0 %v110
    %138 = vmatprep.subr.bf16.mxu0 0
    %139 = vmatpush1.bf16.msra.mxu0 %v111
    %140 = vmatprep.subr.bf16.mxu0 0
    %141 = vmatpush1.bf16.msra.mxu0 0
    %142 = vmatprep.subr.bf16.mxu0 0
    %143 = vmatpush1.bf16.msra.mxu0 0
    %144 = vmatprep.subr.bf16.mxu0 0
    %145 = vmatpush1.bf16.msra.mxu0 0
    %146 = vmatprep.subr.bf16.mxu0 0
    %147 = vmatpush1.bf16.msra.mxu0 0
    %148 = vmatprep.subr.bf16.mxu0 0
    %149 = vmatpush1.bf16.msra.mxu0 0
    %150 = vmatprep.subr.bf16.mxu0 0
    %151 = vmatpush1.bf16.msra.mxu0 0
    %152 = vmatprep.subr.bf16.mxu0 0
    %153 = vmatpush1.bf16.msra.mxu0 0
    %154 = vmatprep.subr.bf16.mxu0 0
    %155 = vmatpush1.bf16.msra.mxu0 0
    %156 = vmatprep.subr.bf16.mxu0 0
    %157 = vmatpush1.bf16.msra.mxu0 0
    %158 = vmatprep.subr.bf16.mxu0 0
    %159 = vmatpush1.bf16.msra.mxu0 0
    %160 = vmatprep.subr.bf16.mxu0 0
    %161 = vmatpush1.bf16.msra.mxu0 0
    %162 = vmatprep.subr.bf16.mxu0 0
    %163 = vmatpush1.bf16.msra.mxu0 0
    %164 = vmatprep.subr.bf16.mxu0 0
    %165 = vmatpush1.bf16.msra.mxu0 0
    %166 = vmatprep.subr.bf16.mxu0 0
    %167 = vmatpush1.bf16.msra.mxu0 0
    %168 = vmatprep.mubr.bf16.mxu0 0
    %169 = vmatmul.mubr.bf16.gmra.mrb[0].mxu0 %v116
    %v170 = vpop.f32.mrb[0].mxu0
    %v171 = vadd.f32 %v100, %v170
    %v172 = vpop.f32.mrb[0].mxu0
    %v173 = vpop.f32.mrb[0].mxu0
    %v174 = vadd.f32 %v100, %v173
    %v175 = vpop.f32.mrb[0].mxu0
    %176 = vmatprep.mubr.bf16.mxu0 0
    %177 = vmatmul.mubr.bf16.gmra.mrb[0].mxu0 %v119
    %v178 = vpop.f32.mrb[0].mxu0
    %v179 = vadd.f32 %v100, %v178
    %v180 = vpop.f32.mrb[0].mxu0
    %v181 = vpop.f32.mrb[0].mxu0
    %v182 = vadd.f32 %v100, %v181
    %v183 = vpop.f32.mrb[0].mxu0
    %184 = vmatprep.mubr.bf16.mxu0 0
    %185 = vmatmul.mubr.bf16.gmra.mrb[0].mxu0 %v122
    %v186 = vpop.f32.mrb[0].mxu0
    %v187 = vadd.f32 %v100, %v186
    %v188 = vpop.f32.mrb[0].mxu0
    %v189 = vpop.f32.mrb[0].mxu0
    %v190 = vadd.f32 %v100, %v189
    %v191 = vpop.f32.mrb[0].mxu0
    %192 = vmatprep.mubr.bf16.mxu0 0
    %193 = vmatmul.mubr.bf16.gmra.mrb[0].mxu0 %v125
    %v194 = vpop.f32.mrb[0].mxu0
    %v195 = vadd.f32 %v100, %v194
    %v196 = vpop.f32.mrb[0].mxu0
    %v197 = vpop.f32.mrb[0].mxu0
    %v198 = vadd.f32 %v100, %v197
    %v199 = vpop.f32.mrb[0].mxu0
    %200 = vmatprep.mubr.bf16.mxu0 0
    %201 = vmatmul.mubr.bf16.gmra.mrb[0].mxu0 %v128
    %v202 = vpop.f32.mrb[0].mxu0
    %v203 = vadd.f32 %v100, %v202
    %v204 = vpop.f32.mrb[0].mxu0
    %v205 = vpop.f32.mrb[0].mxu0
    %v206 = vadd.f32 %v100, %v205
    %v207 = vpop.f32.mrb[0].mxu0
    %208 = vmatprep.mubr.bf16.mxu0 0
    %209 = vmatmul.mubr.bf16.gmra.mrb[0].mxu0 %v131
    %v210 = vpop.f32.mrb[0].mxu0
    %v211 = vadd.f32 %v100, %v210
    %v212 = vpop.f32.mrb[0].mxu0
    %v213 = vpop.f32.mrb[0].mxu0
    %v214 = vadd.f32 %v100, %v213
    %v215 = vpop.f32.mrb[0].mxu0
    %216 = vmatprep.mubr.bf16.mxu0 0
    %217 = vmatmul.mubr.bf16.gmra.mrb[0].mxu0 %v134
    %v218 = vpop.f32.mrb[0].mxu0
    %v219 = vadd.f32 %v100, %v218
    %v220 = vpop.f32.mrb[0].mxu0
    %v221 = vpop.f32.mrb[0].mxu0
    %v222 = vpop.f32.mrb[0].mxu0
    %223 = vdwg.mxu0
    %v224 = vmax.f32 %v171, 0.0
    %v225 = vmax.f32 %v174, 0.0
    %v226 = vmax.f32 %v179, 0.0
    %v227 = vmax.f32 %v182, 0.0
    %v228 = vmax.f32 %v187, 0.0
    %v229 = vmax.f32 %v190, 0.0
    %v230 = vmax.f32 %v195, 0.0
    %v231 = vmax.f32 %v198, 0.0
    %v232 = vmax.f32 %v203, 0.0
    %v233 = vmax.f32 %v206, 0.0
    %v234 = vmax.f32 %v211, 0.0
    %v235 = vmax.f32 %v214, 0.0
    %v236 = vmax.f32 %v219, 0.0
    %v237 = vpack.c.bf16 %v225, %v224
    %v238 = vpack.c.bf16 %v227, %v226
    %v239 = vpack.c.bf16 %v229, %v228
    %v240 = vpack.c.bf16 %v231, %v230
    %v241 = vpack.c.bf16 %v233, %v232
    %v242 = vpack.c.bf16 %v235, %v234
    %v243 = vpack.c.bf16 %v236, %v236
    %v244 = vld [vmem:[%s6] sm:$0xf]
    %v245 = vld [vmem:[%s6 + $0x4] sm:$0xf]
    %v246 = vld [vmem:[%s6 + $0x8] sm:$0xf]
    %v247 = vld [vmem:[%s6 + $0xc] sm:$0xf]
    %v248 = vld [vmem:[%s6 + $0x10] sm:$0xf]
    %v249 = vld [vmem:[%s6 + $0x14] sm:$0xf]
    %v250 = vld [vmem:[%s6 + $0x18] sm:$0xf]
    %v251 = vld [vmem:[%s6 + $0x1c] sm:$0xf]
    %v252 = vld [vmem:[%s6 + $0x20] sm:$0xf]
    %v253 = vld [vmem:[%s6 + $0x24] sm:$0xf]
    %v254 = vld [vmem:[%s6 + $0x28] sm:$0xf]
    %v255 = vld [vmem:[%s6 + $0x2c] sm:$0xf]
    %v256 = vld [vmem:[%s6 + $0x30] sm:$0xf]
    %v257 = vld [vmem:[%s6 + $0x34] sm:$0xf]
    %v258 = vld [vmem:[%s6 + $0x38] sm:$0xf]
    %v259 = vld [vmem:[%s6 + $0x3c] sm:$0xf]
    %v260 = vld [vmem:[%s7] sm:$0x1]
    %v262 = vlaneseq
    %v263 = vshrl.u32 %v262, 7
    %v264 = vsub.s32 0, %v263
    %v265 = vrot.slane %v260, %v264
    %v283 = vunpack.c.l.b16 %v244
    %v284 = vunpack.c.l.b16 %v245
    %v285 = vunpack.c.l.b16 %v246
    %v286 = vunpack.c.l.b16 %v247
    %v287 = vunpack.c.l.b16 %v248
    %v288 = vunpack.c.l.b16 %v249
    %v289 = vunpack.c.l.b16 %v250
    %v290 = vunpack.c.l.b16 %v251
    %v291 = vunpack.c.l.b16 %v252
    %v292 = vunpack.c.l.b16 %v253
    %v293 = vunpack.c.l.b16 %v254
    %v294 = vunpack.c.l.b16 %v255
    %v295 = vunpack.c.l.b16 %v256
    %v296 = vunpack.c.l.b16 %v257
    %v297 = vunpack.c.l.b16 %v258
    %v298 = vunpack.c.l.b16 %v259
    %v299 = vpack.c.b16 %v284, %v283
    %v300 = vpack.c.b16 %v286, %v285
    %v301 = vpack.c.b16 %v288, %v287
    %v302 = vpack.c.b16 %v290, %v289
    %v303 = vpack.c.b16 %v292, %v291
    %v304 = vpack.c.b16 %v294, %v293
    %v305 = vpack.c.b16 %v296, %v295
    %v306 = vpack.c.b16 %v298, %v297
    %315 = vmatprep.subr.bf16.mxu0 0
    %316 = vmatpush1.bf16.msra.mxu0 %v299
    %317 = vmatprep.subr.bf16.mxu0 0
    %318 = vmatpush1.bf16.msra.mxu0 %v300
    %319 = vmatprep.subr.bf16.mxu0 0
    %320 = vmatpush1.bf16.msra.mxu0 %v301
    %321 = vmatprep.subr.bf16.mxu0 0
    %322 = vmatpush1.bf16.msra.mxu0 %v302
    %323 = vmatprep.subr.bf16.mxu0 0
    %324 = vmatpush1.bf16.msra.mxu0 %v303
    %325 = vmatprep.subr.bf16.mxu0 0
    %326 = vmatpush1.bf16.msra.mxu0 %v304
    %327 = vmatprep.subr.bf16.mxu0 0
    %328 = vmatpush1.bf16.msra.mxu0 %v305
    %329 = vmatprep.subr.bf16.mxu0 0
    %330 = vmatpush1.bf16.msra.mxu0 %v306
    %331 = vmatprep.subr.bf16.mxu0 0
    %332 = vmatpush1.bf16.msra.mxu0 0
    %333 = vmatprep.subr.bf16.mxu0 0
    %334 = vmatpush1.bf16.msra.mxu0 0
    %335 = vmatprep.subr.bf16.mxu0 0
    %336 = vmatpush1.bf16.msra.mxu0 0
    %337 = vmatprep.subr.bf16.mxu0 0
    %338 = vmatpush1.bf16.msra.mxu0 0
    %339 = vmatprep.subr.bf16.mxu0 0
    %340 = vmatpush1.bf16.msra.mxu0 0
    %341 = vmatprep.subr.bf16.mxu0 0
    %342 = vmatpush1.bf16.msra.mxu0 0
    %343 = vmatprep.subr.bf16.mxu0 0
    %344 = vmatpush1.bf16.msra.mxu0 0
    %345 = vmatprep.subr.bf16.mxu0 0
    %346 = vmatpush1.bf16.msra.mxu0 0
    %347 = vmatprep.mubr.bf16.mxu0 0
    %348 = vmatmul.mubr.bf16.gmra.mrb[0].mxu0 %v237
    %v349 = vpop.f32.mrb[0].mxu0
    %v350 = vadd.f32 %v265, %v349
    %v351 = vpop.f32.mrb[0].mxu0
    %v352 = vpop.f32.mrb[0].mxu0
    %v353 = vadd.f32 %v265, %v352
    %v354 = vpop.f32.mrb[0].mxu0
    %355 = vmatprep.mubr.bf16.mxu0 0
    %356 = vmatmul.mubr.bf16.gmra.mrb[0].mxu0 %v238
    %v357 = vpop.f32.mrb[0].mxu0
    %v358 = vadd.f32 %v265, %v357
    %v359 = vpop.f32.mrb[0].mxu0
    %v360 = vpop.f32.mrb[0].mxu0
    %v361 = vadd.f32 %v265, %v360
    %v362 = vpop.f32.mrb[0].mxu0
    %363 = vmatprep.mubr.bf16.mxu0 0
    %364 = vmatmul.mubr.bf16.gmra.mrb[0].mxu0 %v239
    %v365 = vpop.f32.mrb[0].mxu0
    %v366 = vadd.f32 %v265, %v365
    %v367 = vpop.f32.mrb[0].mxu0
    %v368 = vpop.f32.mrb[0].mxu0
    %v369 = vadd.f32 %v265, %v368
    %v370 = vpop.f32.mrb[0].mxu0
    %371 = vmatprep.mubr.bf16.mxu0 0
    %372 = vmatmul.mubr.bf16.gmra.mrb[0].mxu0 %v240
    %v373 = vpop.f32.mrb[0].mxu0
    %v374 = vadd.f32 %v265, %v373
    %v375 = vpop.f32.mrb[0].mxu0
    %v376 = vpop.f32.mrb[0].mxu0
    %v377 = vadd.f32 %v265, %v376
    %v378 = vpop.f32.mrb[0].mxu0
    %379 = vmatprep.mubr.bf16.mxu0 0
    %380 = vmatmul.mubr.bf16.gmra.mrb[0].mxu0 %v241
    %v381 = vpop.f32.mrb[0].mxu0
    %v382 = vadd.f32 %v265, %v381
    %v383 = vpop.f32.mrb[0].mxu0
    %v384 = vpop.f32.mrb[0].mxu0
    %v385 = vadd.f32 %v265, %v384
    %v386 = vpop.f32.mrb[0].mxu0
    %387 = vmatprep.mubr.bf16.mxu0 0
    %388 = vmatmul.mubr.bf16.gmra.mrb[0].mxu0 %v242
    %v389 = vpop.f32.mrb[0].mxu0
    %v390 = vadd.f32 %v265, %v389
    %v391 = vpop.f32.mrb[0].mxu0
    %v392 = vpop.f32.mrb[0].mxu0
    %v393 = vadd.f32 %v265, %v392
    %v394 = vpop.f32.mrb[0].mxu0
    %395 = vmatprep.mubr.bf16.mxu0 0
    %396 = vmatmul.mubr.bf16.gmra.mrb[0].mxu0 %v243
    %v397 = vpop.f32.mrb[0].mxu0
    %v398 = vadd.f32 %v265, %v397
    %v399 = vpop.f32.mrb[0].mxu0
    %v400 = vpop.f32.mrb[0].mxu0
    %v401 = vpop.f32.mrb[0].mxu0
    %402 = vdwg.mxu0
    %v403 = vmax.f32 %v350, 0.0
    %v404 = vmax.f32 %v353, 0.0
    %v405 = vmax.f32 %v358, 0.0
    %v406 = vmax.f32 %v361, 0.0
    %v407 = vmax.f32 %v366, 0.0
    %v408 = vmax.f32 %v369, 0.0
    %v409 = vmax.f32 %v374, 0.0
    %v410 = vmax.f32 %v377, 0.0
    %v411 = vmax.f32 %v382, 0.0
    %v412 = vmax.f32 %v385, 0.0
    %v413 = vmax.f32 %v390, 0.0
    %v414 = vmax.f32 %v393, 0.0
    %v415 = vmax.f32 %v398, 0.0
    %v416 = vld [vmem:[%s0] sm:$0xff]
    %v417 = vld [vmem:[%s0 + $0x8] sm:$0xff]
    %v418 = vld [vmem:[%s0 + $0x10] sm:$0xff]
    %v419 = vld [vmem:[%s0 + $0x18] sm:$0xff]
    %v420 = vld [vmem:[%s0 + $0x20] sm:$0xff]
    %v421 = vld [vmem:[%s0 + $0x28] sm:$0xff]
    %v422 = vld [vmem:[%s0 + $0x30] sm:$0xff]
    %v423 = vld [vmem:[%s0 + $0x38] sm:$0xff]
    %v424 = vld [vmem:[%s0 + $0x40] sm:$0xff]
    %v425 = vld [vmem:[%s0 + $0x48] sm:$0xff]
    %v426 = vld [vmem:[%s0 + $0x50] sm:$0xff]
    %v427 = vld [vmem:[%s0 + $0x58] sm:$0xff]
    %v428 = vld [vmem:[%s0 + $0x60] sm:$0xf]
    %vm429 = vcmask 523264
    %430 = vst.msk [vmem:[#allocation2] sm:$0xff] %vm429, %v416
    %431 = vst.msk [vmem:[#allocation2 + $0x8] sm:$0xff] %vm429, %v417
    %432 = vst.msk [vmem:[#allocation2 + $0x10] sm:$0xff] %vm429, %v418
    %433 = vst.msk [vmem:[#allocation2 + $0x18] sm:$0xff] %vm429, %v419
    %434 = vst.msk [vmem:[#allocation2 + $0x20] sm:$0xff] %vm429, %v420
    %435 = vst.msk [vmem:[#allocation2 + $0x28] sm:$0xff] %vm429, %v421
    %436 = vst.msk [vmem:[#allocation2 + $0x30] sm:$0xff] %vm429, %v422
    %437 = vst.msk [vmem:[#allocation2 + $0x38] sm:$0xff] %vm429, %v423
    %438 = vst.msk [vmem:[#allocation2 + $0x40] sm:$0xff] %vm429, %v424
    %439 = vst.msk [vmem:[#allocation2 + $0x48] sm:$0xff] %vm429, %v425
    %440 = vst.msk [vmem:[#allocation2 + $0x50] sm:$0xff] %vm429, %v426
    %441 = vst.msk [vmem:[#allocation2 + $0x58] sm:$0xff] %vm429, %v427
    %vm442 = vcmask 519168
    %443 = vst.msk [vmem:[#allocation2 + $0x60] sm:$0xf] %vm442, %v428
    %457 = vrot.lane.b32.xlu0 %v403, 64
    %v458 = vpop.permute.xlu0 %457
    %459 = vrot.lane.b32.xlu0 %v404, 64
    %v460 = vpop.permute.xlu0 %459
    %461 = vrot.lane.b32.xlu0 %v405, 64
    %v462 = vpop.permute.xlu0 %461
    %463 = vrot.lane.b32.xlu0 %v406, 64
    %v464 = vpop.permute.xlu0 %463
    %465 = vrot.lane.b32.xlu0 %v407, 64
    %v466 = vpop.permute.xlu0 %465
    %467 = vrot.lane.b32.xlu0 %v408, 64
    %v468 = vpop.permute.xlu0 %467
    %469 = vrot.lane.b32.xlu0 %v409, 64
    %v470 = vpop.permute.xlu0 %469
    %471 = vrot.lane.b32.xlu0 %v410, 64
    %v472 = vpop.permute.xlu0 %471
    %473 = vrot.lane.b32.xlu0 %v411, 64
    %v474 = vpop.permute.xlu0 %473
    %475 = vrot.lane.b32.xlu0 %v412, 64
    %v476 = vpop.permute.xlu0 %475
    %477 = vrot.lane.b32.xlu0 %v413, 64
    %v478 = vpop.permute.xlu0 %477
    %479 = vrot.lane.b32.xlu0 %v414, 64
    %v480 = vpop.permute.xlu0 %479
    %481 = vrot.lane.b32.xlu0 %v415, 64
    %v482 = vpop.permute.xlu0 %481
    %vm496 = vcmask 1048064
    %497 = vst.msk [vmem:[#allocation2] sm:$0xff] %vm496, %v458
    %498 = vst.msk [vmem:[#allocation2 + $0x8] sm:$0xff] %vm496, %v460
    %499 = vst.msk [vmem:[#allocation2 + $0x10] sm:$0xff] %vm496, %v462
    %500 = vst.msk [vmem:[#allocation2 + $0x18] sm:$0xff] %vm496, %v464
    %501 = vst.msk [vmem:[#allocation2 + $0x20] sm:$0xff] %vm496, %v466
    %502 = vst.msk [vmem:[#allocation2 + $0x28] sm:$0xff] %vm496, %v468
    %503 = vst.msk [vmem:[#allocation2 + $0x30] sm:$0xff] %vm496, %v470
    %504 = vst.msk [vmem:[#allocation2 + $0x38] sm:$0xff] %vm496, %v472
    %505 = vst.msk [vmem:[#allocation2 + $0x40] sm:$0xff] %vm496, %v474
    %506 = vst.msk [vmem:[#allocation2 + $0x48] sm:$0xff] %vm496, %v476
    %507 = vst.msk [vmem:[#allocation2 + $0x50] sm:$0xff] %vm496, %v478
    %508 = vst.msk [vmem:[#allocation2 + $0x58] sm:$0xff] %vm496, %v480
    %vm509 = vcmask 1043968
    %510 = vst.msk [vmem:[#allocation2 + $0x60] sm:$0xf] %vm509, %v482
    // Predicated region
    $region34: #{tpu_custom_call.1} parent=1 // pred_check
      _
    $region35: #{tpu_custom_call.1} parent=1 // pred_check_branch
      %512 = sbr.rel (0) target = $region37
    $region36: #{tpu_custom_call.1} parent=1 // pred_region
      %s514 = ssub.s32 1664, 1664
      %515 = vsyncadd [#allocation3], %s514
      %s516 = sshll.u32 [#allocation2], 4
      %s517 = int_to_ptr.vmem [resolvable:$true] %s516
      %522 = dma.vmem_to_hbm [thread:$0]  %s517, 1664, %s8, [#allocation3], 128, 128, 8
    $region37: #{tpu_custom_call.1} parent=1 // pred_fallthru
      _
    // Predicated region
    $region38: #{tpu_custom_call.1} parent=1 // pred_check
      _
    $region39: #{tpu_custom_call.1} parent=1 // pred_check_branch
      %524 = sbr.rel (0) target = $region41
    $region40: #{tpu_custom_call.1} parent=1 // pred_region
      %525 = dma.done [#allocation3], 1664
    $region41: #{tpu_custom_call.1} parent=1 // pred_fallthru
      _
    %526 = vsyncpa [#allocation3], 1

</llo_original>
